<compile_context>
chip_gen: v7x
topology: tpu7x:2x2x1
jax: 0.10.0
libtpu: 0.0.40
codegen_flags: <defaults>
</compile_context>

<pallas_src>
import functools

import jax
import jax.numpy as jnp
from jax.experimental import pallas as pl
from jax.experimental.pallas import tpu as pltpu

IGNORE_INDEX = 255
_MAX_TILE = 32768                  # upper bound on the lane (pixel) tile


def _round_up(x, m):
    return (x + m - 1) // m * m


def _vmem_capacity_bytes():
    try:
        cap = getattr(pltpu.get_tpu_info(), "vmem_capacity_bytes", None)
        if cap:
            return int(cap)
    except Exception:
        pass
    return 64 * 1024 * 1024        # conservative fallback (v7x-sized)


def _plan(n, c, hw, x_itemsize, t_itemsize):
    """Pick lane tile, super-tile split and a VMEM limit from static shapes."""
    c_pad = _round_up(c, 8)
    # per-lane VMEM footprint: double-buffered logits + targets tiles,
    # two resident f32 accumulators (+ writeback), iota scratch.
    per_lane = (2 * c_pad * x_itemsize      # logits tile, double-buffered
                + 2 * 8 * t_itemsize        # targets tile (sublane-padded)
                + 4 * 8 * 4                 # two f32 (1, TILE) accumulators
                + c_pad * 4)                # class-index iota scratch
    vmem_cap = _vmem_capacity_bytes()
    budget = max(vmem_cap // 8, 2 * 1024 * 1024)
    cap = max(128, (budget // per_lane) // 128 * 128)
    tile = max(128, min(_MAX_TILE, cap, _round_up(hw, 128)))
    num_tiles = pl.cdiv(hw, tile)

    # Feed both v7x TensorCores: make the parallel work (N * S) >= 2 and even.
    if n % 2 == 1 and num_tiles < 2 and hw > 128:
        tile = max(128, _round_up(pl.cdiv(hw, 2), 128))
        num_tiles = pl.cdiv(hw, tile)
    s = 2 if (n % 2 == 1 and num_tiles >= 2) else 1
    tiles_per_s = pl.cdiv(num_tiles, s)

    vmem_limit = min(vmem_cap, max(2 * per_lane * tile, 16 * 1024 * 1024))
    return tile, num_tiles, s, tiles_per_s, vmem_limit


def _ce2d_kernel(x_ref, t_ref, *rest, has_weight, tiles_per_s, tile, hw):
    """One (batch, super-tile, pixel-tile) step: channel LSE + target gather,
    lane-wise masked accumulation into the resident (1, TILE) outputs."""
    if has_weight:
        w_ref, loss_ref, wsum_ref, cls_ref = rest
    else:
        w_ref = None
        loss_ref, wsum_ref, cls_ref = rest

    s_idx = pl.program_id(1)   # super-tile axis ("parallel")
    i = pl.program_id(2)       # pixel-tile axis within super-tile ("arbitrary")

    @pl.when(i == 0)
    def _init():
        # Re-initialized for every (n, super-tile) group so it stays correct
        # when the parallel axes are sharded across TensorCores.
        loss_ref[...] = jnp.zeros_like(loss_ref)
        wsum_ref[...] = jnp.zeros_like(wsum_ref)
        cls_ref[...] = jax.lax.broadcasted_iota(jnp.int32, cls_ref.shape, 0)

    x = x_ref[...].astype(jnp.float32)            # (C, TILE)
    t = t_ref[...].astype(jnp.int32)              # (1, TILE)

    # log-sum-exp over the channel (sublane) axis; reuse (x - m) for the
    # target-logit select:  lse - x_t == log(sum exp(x - m)) - (x_t - m)
    m = jnp.max(x, axis=0, keepdims=True)                             # (1, TILE)
    xm = x - m                                                        # (C, TILE)
    sum_e = jnp.sum(jnp.exp(xm), axis=0, keepdims=True)               # (1, TILE)

    onehot = cls_ref[...] == t                                        # (C, TILE)
    sel = jnp.sum(jnp.where(onehot, xm, 0.0), axis=0, keepdims=True)  # x_t - m
    nll = jnp.log(sum_e) - sel                                        # (1, TILE)

    # Mask the ragged tail of the pixel axis (and any clamped overhang tile)
    # plus ignore_index pixels.  Always jnp.where (select), never a 0/1
    # multiply, so garbage lanes cannot produce 0*inf NaNs.
    lane = jax.lax.broadcasted_iota(jnp.int32, t.shape, 1)            # (1, TILE)
    pos = (s_idx * tiles_per_s + i) * tile + lane
    mask = jnp.logical_and(pos < hw, t != IGNORE_INDEX)               # (1, TILE)

    if has_weight:
        w = w_ref[...].astype(jnp.float32)                            # (C, 1)
        wv = jnp.sum(jnp.where(onehot, w, 0.0), axis=0, keepdims=True)
        loss_ref[...] += jnp.where(mask, wv * nll, 0.0)
        wsum_ref[...] += jnp.where(mask, wv, 0.0)
    else:
        loss_ref[...] += jnp.where(mask, nll, 0.0)
        wsum_ref[...] += jnp.where(mask, 1.0, 0.0)


@functools.partial(jax.jit, static_argnames=("size_average",))
def cross_entropy_loss_2d(inputs, targets, weight=None, size_average=True):
    """inputs: (N, C, H, W) f32/bf16, targets: (N, H, W) int, weight: (C,) or None."""
    N, C, H, W = inputs.shape
    HW = H * W
    TILE, num_tiles, S, tiles_per_s, vmem_limit = _plan(
        N, C, HW,
        jnp.dtype(inputs.dtype).itemsize, jnp.dtype(targets.dtype).itemsize)

    # contiguous views only: no transpose, no pad, no dtype cast in HBM
    x = inputs.reshape(N, C, HW)
    t = targets.reshape(N, 1, HW)

    has_weight = weight is not None
    overhang = S * tiles_per_s > num_tiles

    def _g(s, i):
        g = s * tiles_per_s + i
        if overhang:                              # clamp fully-OOB overhang
            g = jnp.minimum(g, num_tiles - 1)     # tile; kernel masks it out
        return g

    in_specs = [
        pl.BlockSpec((pl.Squeezed(), C, TILE), lambda n, s, i: (n, 0, _g(s, i))),
        pl.BlockSpec((pl.Squeezed(), 1, TILE), lambda n, s, i: (n, 0, _g(s, i))),
    ]
    args = [x, t]
    if has_weight:
        in_specs.append(pl.BlockSpec((C, 1), lambda n, s, i: (0, 0)))
        args.append(weight.reshape(C, 1).astype(jnp.float32))

    out_specs = [
        pl.BlockSpec((pl.Squeezed(), 1, TILE), lambda n, s, i: (n * S + s, 0, 0)),
        pl.BlockSpec((pl.Squeezed(), 1, TILE), lambda n, s, i: (n * S + s, 0, 0)),
    ]
    out_shape = (
        jax.ShapeDtypeStruct((N * S, 1, TILE), jnp.float32),
        jax.ShapeDtypeStruct((N * S, 1, TILE), jnp.float32),
    )

    loss_parts, w_parts = pl.pallas_call(
        functools.partial(_ce2d_kernel, has_weight=has_weight,
                          tiles_per_s=tiles_per_s, tile=TILE, hw=HW),
        out_shape=out_shape,
        grid_spec=pltpu.PrefetchScalarGridSpec(
            num_scalar_prefetch=0,
            grid=(N, S, tiles_per_s),
            in_specs=in_specs,
            out_specs=out_specs,
            scratch_shapes=[pltpu.VMEM((C, TILE), jnp.int32)],
        ),
        compiler_params=pltpu.CompilerParams(
            dimension_semantics=("parallel", "parallel", "arbitrary"),
            vmem_limit_bytes=vmem_limit,
        ),
    )(*args)

    loss_sum = jnp.sum(loss_parts)
    wsum = jnp.sum(w_parts)
    if size_average:
        # Mirrors PyTorch: NaN if every pixel is ignore_index.
        return loss_sum / wsum
    return loss_sum


def _reference(inputs, targets, weight=None):
    """Pure-JAX reference mirroring NLLLoss2d(log_softmax(x, dim=1), t)."""
    logp = jax.nn.log_softmax(inputs.astype(jnp.float32), axis=1)  # (N, C, H, W)
    t = targets.astype(jnp.int32)
    valid = t != IGNORE_INDEX
    t_safe = jnp.where(valid, t, 0)
    sel = jnp.take_along_axis(logp, t_safe[:, None, :, :], axis=1)[:, 0]
    w_sel = jnp.ones_like(sel) if weight is None else weight[t_safe]
    num = jnp.sum(jnp.where(valid, -w_sel * sel, 0.0))
    den = jnp.sum(jnp.where(valid, w_sel, 0.0))
    return num / den


if __name__ == "__main__":
    key = jax.random.PRNGKey(0)

    # --- test 1: module defaults (weight=None), even batch ---------------
    N, C, H, W = 2, 4, 16, 16
    k1, k2, k3, k4 = jax.random.split(key, 4)
    inputs = jax.random.normal(k1, (N, C, H, W), dtype=jnp.float32)
    targets = jax.random.randint(k2, (N, H, W), 0, C, dtype=jnp.int32)
    targets = targets.at[0, 0, :4].set(IGNORE_INDEX)
    targets = targets.at[1, 5, 7].set(IGNORE_INDEX)

    loss = jax.block_until_ready(cross_entropy_loss_2d(inputs, targets, None))
    ref = _reference(inputs, targets, None)
    assert jnp.allclose(loss, ref, rtol=1e-4, atol=1e-5), (loss, ref)

    # --- test 2: explicit per-class weights -------------------------------
    weight = jnp.linspace(0.5, 2.0, C, dtype=jnp.float32)
    loss_w = jax.block_until_ready(cross_entropy_loss_2d(inputs, targets, weight))
    ref_w = _reference(inputs, targets, weight)
    assert jnp.allclose(loss_w, ref_w, rtol=1e-4, atol=1e-5), (loss_w, ref_w)

    # --- test 3: odd batch + ragged pixel axis (super-tile split, masking) -
    N3, C3, H3, W3 = 1, 3, 20, 20
    in3 = jax.random.normal(k3, (N3, C3, H3, W3), dtype=jnp.float32)
    tg3 = jax.random.randint(k4, (N3, H3, W3), 0, C3, dtype=jnp.int32)
    tg3 = tg3.at[0, 2, :5].set(IGNORE_INDEX)
    loss3 = jax.block_until_ready(cross_entropy_loss_2d(in3, tg3, None))
    ref3 = _reference(in3, tg3, None)
    assert jnp.allclose(loss3, ref3, rtol=1e-4, atol=1e-5), (loss3, ref3)

    # --- test 4: larger odd-batch case exercising the overhang-tile clamp --
    k5, k6 = jax.random.split(k4)
    N4, C4, H4, W4 = 1, 4, 265, 265
    in4 = jax.random.normal(k5, (N4, C4, H4, W4), dtype=jnp.float32)
    tg4 = jax.random.randint(k6, (N4, H4, W4), 0, C4, dtype=jnp.int32)
    tg4 = tg4.at[0, :3, :].set(IGNORE_INDEX)
    loss4 = jax.block_until_ready(cross_entropy_loss_2d(in4, tg4, None))
    ref4 = _reference(in4, tg4, None)
    assert jnp.allclose(loss4, ref4, rtol=1e-4, atol=1e-5), (loss4, ref4)

    print("KERNEL_OK")
</pallas_src>

<mosaic_0001>
module attributes {stable_mosaic.version = 11 : i64} {
  func.func @_ce2d_kernel(%arg0: i32, %arg1: i32, %arg2: i32, %arg3: memref<1x4x256xf32, #tpu.memory_space<vmem>>, %arg4: memref<1x1x256xi32, #tpu.memory_space<vmem>>, %arg5: memref<1x1x256xf32, #tpu.memory_space<vmem>>, %arg6: memref<1x1x256xf32, #tpu.memory_space<vmem>>, %arg7: memref<4x256xi32, #tpu.memory_space<vmem>>) attributes {dimension_semantics = [#tpu.dimension_semantics<parallel>, #tpu.dimension_semantics<parallel>, #tpu.dimension_semantics<arbitrary>], iteration_bounds = array<i64: 2, 1, 1>, scalar_prefetch = 0 : i64, scratch_operands = 1 : i64, tpu.core_type = #tpu.core_type<tc>, window_params = [{transform_indices = @transform_0, window_bounds = array<i64: 1, 4, 256>}, {transform_indices = @transform_1, window_bounds = array<i64: 1, 1, 256>}, {transform_indices = @transform_2, window_bounds = array<i64: 1, 1, 256>}, {transform_indices = @transform_3, window_bounds = array<i64: 1, 1, 256>}]} {
    %c0_i32 = arith.constant 0 : i32
    %0 = arith.cmpi eq, %arg2, %c0_i32 : i32
    %1 = arith.extui %0 : i1 to i32
    %c0_i32_0 = arith.constant 0 : i32
    %2 = arith.cmpi ne, %1, %c0_i32_0 : i32
    scf.if %2 {
      %cst_27 = arith.constant 0.000000e+00 : f32
      %51 = vector.broadcast %cst_27 : f32 to vector<1x256xf32>
      %c0_28 = arith.constant 0 : index
      %c0_29 = arith.constant 0 : index
      %c0_30 = arith.constant 0 : index
      %52 = vector.load %arg5[%c0_28, %c0_29, %c0_30] : memref<1x1x256xf32, #tpu.memory_space<vmem>>, vector<1x1x256xf32>
      %53 = vector.shape_cast %52 : vector<1x1x256xf32> to vector<1x256xf32>
      %54 = vector.shape_cast %51 : vector<1x256xf32> to vector<1x1x256xf32>
      tpu.vector_store %arg5[%c0_28, %c0_29, %c0_30], %54 {strides = array<i32>} : memref<1x1x256xf32, #tpu.memory_space<vmem>>, vector<1x1x256xf32>,
      %cst_31 = arith.constant 0.000000e+00 : f32
      %55 = vector.broadcast %cst_31 : f32 to vector<1x256xf32>
      %c0_32 = arith.constant 0 : index
      %c0_33 = arith.constant 0 : index
      %c0_34 = arith.constant 0 : index
      %56 = vector.load %arg6[%c0_32, %c0_33, %c0_34] : memref<1x1x256xf32, #tpu.memory_space<vmem>>, vector<1x1x256xf32>
      %57 = vector.shape_cast %56 : vector<1x1x256xf32> to vector<1x256xf32>
      %58 = vector.shape_cast %55 : vector<1x256xf32> to vector<1x1x256xf32>
      tpu.vector_store %arg6[%c0_32, %c0_33, %c0_34], %58 {strides = array<i32>} : memref<1x1x256xf32, #tpu.memory_space<vmem>>, vector<1x1x256xf32>,
      %59 = tpu.iota {dimensions = array<i32: 0>} : vector<4x256xi32>
      %c0_35 = arith.constant 0 : index
      %c0_36 = arith.constant 0 : index
      %60 = vector.load %arg7[%c0_35, %c0_36] : memref<4x256xi32, #tpu.memory_space<vmem>>, vector<4x256xi32>
      tpu.vector_store %arg7[%c0_35, %c0_36], %59 {strides = array<i32>} : memref<4x256xi32, #tpu.memory_space<vmem>>, vector<4x256xi32>,
    } else {
    }
    %c0 = arith.constant 0 : index
    %c0_1 = arith.constant 0 : index
    %c0_2 = arith.constant 0 : index
    %3 = vector.load %arg3[%c0, %c0_1, %c0_2] : memref<1x4x256xf32, #tpu.memory_space<vmem>>, vector<1x4x256xf32>
    %4 = vector.shape_cast %3 : vector<1x4x256xf32> to vector<4x256xf32>
    %c0_3 = arith.constant 0 : index
    %c0_4 = arith.constant 0 : index
    %c0_5 = arith.constant 0 : index
    %5 = vector.load %arg4[%c0_3, %c0_4, %c0_5] : memref<1x1x256xi32, #tpu.memory_space<vmem>>, vector<1x1x256xi32>
    %6 = vector.shape_cast %5 : vector<1x1x256xi32> to vector<1x256xi32>
    %cst = arith.constant dense<0xFF800000> : vector<256xf32>
    %7 = vector.multi_reduction <maximumf>, %4, %cst [0] : vector<4x256xf32> to vector<256xf32>
    %8 = vector.shape_cast %7 : vector<256xf32> to vector<1x256xf32>
    %9 = vector.broadcast %8 : vector<1x256xf32> to vector<4x256xf32>
    %10 = arith.subf %4, %9 : vector<4x256xf32>
    %11 = math.exp %10 : vector<4x256xf32>
    %cst_6 = arith.constant dense<0.000000e+00> : vector<256xf32>
    %12 = vector.multi_reduction <add>, %11, %cst_6 [0] : vector<4x256xf32> to vector<256xf32>
    %13 = vector.shape_cast %12 : vector<256xf32> to vector<1x256xf32>
    %c0_7 = arith.constant 0 : index
    %c0_8 = arith.constant 0 : index
    %14 = vector.load %arg7[%c0_7, %c0_8] : memref<4x256xi32, #tpu.memory_space<vmem>>, vector<4x256xi32>
    %15 = vector.broadcast %6 : vector<1x256xi32> to vector<4x256xi32>
    %16 = arith.cmpi eq, %14, %15 : vector<4x256xi32>
    %cst_9 = arith.constant 0.000000e+00 : f32
    %17 = vector.broadcast %cst_9 : f32 to vector<4x256xf32>
    %18 = arith.select %16, %10, %17 : vector<4x256xi1>, vector<4x256xf32>
    %cst_10 = arith.constant dense<0.000000e+00> : vector<256xf32>
    %19 = vector.multi_reduction <add>, %18, %cst_10 [0] : vector<4x256xf32> to vector<256xf32>
    %20 = vector.shape_cast %19 : vector<256xf32> to vector<1x256xf32>
    %21 = math.log %13 : vector<1x256xf32>
    %22 = arith.subf %21, %20 : vector<1x256xf32>
    %23 = tpu.iota {dimensions = array<i32: 1>} : vector<1x256xi32>
    %c1_i32 = arith.constant 1 : i32
    %24 = arith.muli %arg1, %c1_i32 : i32
    %25 = arith.addi %24, %arg2 : i32
    %c256_i32 = arith.constant 256 : i32
    %26 = arith.muli %25, %c256_i32 : i32
    %27 = vector.broadcast %26 : i32 to vector<1x256xi32>
    %28 = arith.addi %27, %23 : vector<1x256xi32>
    %c256_i32_11 = arith.constant 256 : i32
    %29 = vector.broadcast %c256_i32_11 : i32 to vector<1x256xi32>
    %30 = arith.cmpi slt, %28, %29 : vector<1x256xi32>
    %c255_i32 = arith.constant 255 : i32
    %31 = vector.broadcast %c255_i32 : i32 to vector<1x256xi32>
    %32 = arith.cmpi ne, %6, %31 : vector<1x256xi32>
    %33 = arith.andi %30, %32 : vector<1x256xi1>
    %c0_12 = arith.constant 0 : index
    %c0_13 = arith.constant 0 : index
    %c0_14 = arith.constant 0 : index
    %34 = vector.load %arg5[%c0_12, %c0_13, %c0_14] : memref<1x1x256xf32, #tpu.memory_space<vmem>>, vector<1x1x256xf32>
    %35 = vector.shape_cast %34 : vector<1x1x256xf32> to vector<1x256xf32>
    %cst_15 = arith.constant 0.000000e+00 : f32
    %36 = vector.broadcast %cst_15 : f32 to vector<1x256xf32>
    %37 = arith.select %33, %22, %36 : vector<1x256xi1>, vector<1x256xf32>
    %38 = arith.addf %35, %37 : vector<1x256xf32>
    %c0_16 = arith.constant 0 : index
    %c0_17 = arith.constant 0 : index
    %c0_18 = arith.constant 0 : index
    %39 = vector.load %arg5[%c0_16, %c0_17, %c0_18] : memref<1x1x256xf32, #tpu.memory_space<vmem>>, vector<1x1x256xf32>
    %40 = vector.shape_cast %39 : vector<1x1x256xf32> to vector<1x256xf32>
    %41 = vector.shape_cast %38 : vector<1x256xf32> to vector<1x1x256xf32>
    tpu.vector_store %arg5[%c0_16, %c0_17, %c0_18], %41 {strides = array<i32>} : memref<1x1x256xf32, #tpu.memory_space<vmem>>, vector<1x1x256xf32>,
    %c0_19 = arith.constant 0 : index
    %c0_20 = arith.constant 0 : index
    %c0_21 = arith.constant 0 : index
    %42 = vector.load %arg6[%c0_19, %c0_20, %c0_21] : memref<1x1x256xf32, #tpu.memory_space<vmem>>, vector<1x1x256xf32>
    %43 = vector.shape_cast %42 : vector<1x1x256xf32> to vector<1x256xf32>
    %cst_22 = arith.constant 1.000000e+00 : f32
    %cst_23 = arith.constant 0.000000e+00 : f32
    %44 = vector.broadcast %cst_22 : f32 to vector<1x256xf32>
    %45 = vector.broadcast %cst_23 : f32 to vector<1x256xf32>
    %46 = arith.select %33, %44, %45 : vector<1x256xi1>, vector<1x256xf32>
    %47 = arith.addf %43, %46 : vector<1x256xf32>
    %c0_24 = arith.constant 0 : index
    %c0_25 = arith.constant 0 : index
    %c0_26 = arith.constant 0 : index
    %48 = vector.load %arg6[%c0_24, %c0_25, %c0_26] : memref<1x1x256xf32, #tpu.memory_space<vmem>>, vector<1x1x256xf32>
    %49 = vector.shape_cast %48 : vector<1x1x256xf32> to vector<1x256xf32>
    %50 = vector.shape_cast %47 : vector<1x256xf32> to vector<1x1x256xf32>
    tpu.vector_store %arg6[%c0_24, %c0_25, %c0_26], %50 {strides = array<i32>} : memref<1x1x256xf32, #tpu.memory_space<vmem>>, vector<1x1x256xf32>,
    return
  }
  func.func @transform_0(%arg0: i32, %arg1: i32, %arg2: i32) -> (i32, i32, i32) {
    %c1_i32 = arith.constant 1 : i32
    %0 = arith.muli %arg1, %c1_i32 : i32
    %1 = arith.addi %0, %arg2 : i32
    %c0_i32 = arith.constant 0 : i32
    %c0_i32_0 = arith.constant 0 : i32
    return %arg0, %c0_i32, %1 : i32, i32, i32
  }
  func.func @transform_1(%arg0: i32, %arg1: i32, %arg2: i32) -> (i32, i32, i32) {
    %c1_i32 = arith.constant 1 : i32
    %0 = arith.muli %arg1, %c1_i32 : i32
    %1 = arith.addi %0, %arg2 : i32
    %c0_i32 = arith.constant 0 : i32
    %c0_i32_0 = arith.constant 0 : i32
    return %arg0, %c0_i32, %1 : i32, i32, i32
  }
  func.func @transform_2(%arg0: i32, %arg1: i32, %arg2: i32) -> (i32, i32, i32) {
    %c1_i32 = arith.constant 1 : i32
    %0 = arith.muli %arg0, %c1_i32 : i32
    %1 = arith.addi %0, %arg1 : i32
    %c0_i32 = arith.constant 0 : i32
    %c0_i32_0 = arith.constant 0 : i32
    %c0_i32_1 = arith.constant 0 : i32
    return %1, %c0_i32, %c0_i32_0 : i32, i32, i32
  }
  func.func @transform_3(%arg0: i32, %arg1: i32, %arg2: i32) -> (i32, i32, i32) {
    %c1_i32 = arith.constant 1 : i32
    %0 = arith.muli %arg0, %c1_i32 : i32
    %1 = arith.addi %0, %arg1 : i32
    %c0_i32 = arith.constant 0 : i32
    %c0_i32_0 = arith.constant 0 : i32
    %c0_i32_1 = arith.constant 0 : i32
    return %1, %c0_i32, %c0_i32_0 : i32, i32, i32
  }
}

</mosaic_0001>

<llo_original>
// kernel: cross_entropy_loss_2d.1
$region0: #{cross_entropy_loss_2d.1}
  #allocation0 [shape = 'u32[]', space=smem, size = 0x4, offset = 0x4, fixed_abs, tag = 'smem constant byte address 0x4 - core index']
  #allocation1 [shape = 'u32[144,128]{1,0:T(1,128)}', space=vmem, size = 0x12000, scoped, tag = 'internal scratch']
  #allocation2 [shape = 's32[4,256]{1,0:T(4,128)}', space=vmem, size = 0x1000, scoped, tag = 'scratch operand']
  %s0 = inlined_call_operand.vmem [shape: f32[2,4,256], index: 0, kind: input, shape index: {}]
  %s1 = inlined_call_operand.vmem [shape: s32[2,1,256], index: 1, kind: input, shape index: {}]
  %s2 = inlined_call_operand.vmem [shape: f32[2,1,256], index: 2, kind: output, shape index: {0}]
  %s3 = inlined_call_operand.vmem [shape: f32[2,1,256], index: 3, kind: output, shape index: {1}]
  %4 = xla_tuple %s2, %s3
  %s5 = sld [smem:[#allocation0]]
  $region53: #{cross_entropy_loss_2d.1} parent=0
    _
  %s7 = ssub.s32 1, %s5
  %s8 = scalar_select 0, %s7, %s5
  loop: start=0, step=1, limit=4
  $region2: #{cross_entropy_loss_2d.1} parent=0 // loop_pre_header
    _
  $region3: #{cross_entropy_loss_2d.1} parent=0 // loop_header
    %s10 = sphi 0, %s14
    %p11 = scmp.ge.s32.totalorder %s10, 4
    %s17 = sphi 0, %s36
    %s18 = sphi 0, %s32
    %s19 = sphi 0, %s28
    %s20 = sphi 0, %s17
    %s21 = sphi 0, %s18
    %s22 = sphi 0, %s19
    %s23 = sphi 0, %s20
    %s24 = sphi 0, %s21
    %s25 = sphi 0, %s22
    %s43 = sphi 0, %s45
    %s46 = sphi 0, %s43
    %s47 = sphi 0, %s46
    %s63 = sphi 0, %s47
    %s73 = sphi 0, %s75
    %s76 = sphi 0, %s73
    %s77 = sphi 0, %s76
    %s93 = sphi 0, %s77
    %s101 = sphi 0, %s103
    %s104 = sphi 0, %s101
    %s105 = sphi 0, %s104
    %s121 = sphi 0, %s105
    %s129 = sphi 0, %s131
    %s132 = sphi 0, %s129
    %s133 = sphi 0, %s132
    %s149 = sphi 0, %s133
  $region4: #{cross_entropy_loss_2d.1} parent=0 // loop_header_branch
    %13 = sbr.rel (%p11) target = $region8
  $region5: #{cross_entropy_loss_2d.1} parent=0 // loop_body
    %s15 = ssub.s32 %s10, 1
    %s16 = ssub.s32 %s10, 2
    %s26 = sadd.s32 1, %s19
    %p27 = scmp.ge.s32.totalorder %s26, 1
    %s28 = scalar_select %p27, 0, %s26
    %s29 = sadd.s32 1, %s18
    %s30 = scalar_select %p27, %s29, %s18
    %p31 = scmp.ge.s32.totalorder %s30, 1
    %s32 = scalar_select %p31, 0, %s30
    %s33 = sadd.s32 1, %s17
    %s34 = scalar_select %p31, %s33, %s17
    %p35 = scmp.ge.s32.totalorder %s34, 2
    %s36 = scalar_select %p35, 0, %s34
    %s37 = sadd.s32 %s18, %s19
    %s38 = sadd.s32 %s32, %s28
    %s39 = ssub.s32 %s17, %s36
    %s40 = ssub.s32 %s37, %s38
    %s41 = sor.u32 %s39, %s40
    %p42 = scmp.eq.s32.totalorder %s41, 0
    %s44 = sadd.s32 %s43, 1
    %s45 = scalar_select %p42, %s43, %s44
    %p48 = pneg %p42
    %p49 = scmp.eq.s32.totalorder %s10, 1
    %p50 = por %p48, %p49
    %p51 = scmp.ne.s32.totalorder %s43, %s46
    %p52 = scmp.eq.s32.totalorder %s10, 0
    %p53 = por %p51, %p52
    %p54 = scmp.ne.s32.totalorder %s43, %s46
    %p55 = scmp.eq.s32.totalorder %s15, 1
    %p56 = por %p54, %p55
    %p57 = scmp.ne.s32.totalorder %s46, %s47
    %p58 = scmp.eq.s32.totalorder %s15, 0
    %p59 = por %p57, %p58
    %p60 = scmp.ne.s32.totalorder %s46, %s47
    %p61 = scmp.eq.s32.totalorder %s16, 1
    %p62 = por %p60, %p61
    %p64 = scmp.ne.s32.totalorder %s47, %s63
    %p65 = scmp.eq.s32.totalorder %s16, 0
    %p66 = por %p64, %p65
    %s67 = sadd.s32 %s18, %s19
    %s68 = sadd.s32 %s32, %s28
    %s69 = ssub.s32 %s17, %s36
    %s70 = ssub.s32 %s67, %s68
    %s71 = sor.u32 %s69, %s70
    %p72 = scmp.eq.s32.totalorder %s71, 0
    %s74 = sadd.s32 %s73, 1
    %s75 = scalar_select %p72, %s73, %s74
    %p78 = pneg %p72
    %p79 = scmp.eq.s32.totalorder %s10, 1
    %p80 = por %p78, %p79
    %p81 = scmp.ne.s32.totalorder %s73, %s76
    %p82 = scmp.eq.s32.totalorder %s10, 0
    %p83 = por %p81, %p82
    %p84 = scmp.ne.s32.totalorder %s73, %s76
    %p85 = scmp.eq.s32.totalorder %s15, 1
    %p86 = por %p84, %p85
    %p87 = scmp.ne.s32.totalorder %s76, %s77
    %p88 = scmp.eq.s32.totalorder %s15, 0
    %p89 = por %p87, %p88
    %p90 = scmp.ne.s32.totalorder %s76, %s77
    %p91 = scmp.eq.s32.totalorder %s16, 1
    %p92 = por %p90, %p91
    %p94 = scmp.ne.s32.totalorder %s77, %s93
    %p95 = scmp.eq.s32.totalorder %s16, 0
    %p96 = por %p94, %p95
    %s97 = sadd.s32 %s17, %s18
    %s98 = sadd.s32 %s36, %s32
    %s99 = ssub.s32 %s97, %s98
    %p100 = scmp.eq.s32.totalorder %s99, 0
    %s102 = sadd.s32 %s101, 1
    %s103 = scalar_select %p100, %s101, %s102
    %p106 = pneg %p100
    %p107 = scmp.eq.s32.totalorder %s10, 1
    %p108 = por %p106, %p107
    %p109 = scmp.ne.s32.totalorder %s101, %s104
    %p110 = scmp.eq.s32.totalorder %s10, 0
    %p111 = por %p109, %p110
    %p112 = scmp.ne.s32.totalorder %s101, %s104
    %p113 = scmp.eq.s32.totalorder %s15, 1
    %p114 = por %p112, %p113
    %p115 = scmp.ne.s32.totalorder %s104, %s105
    %p116 = scmp.eq.s32.totalorder %s15, 0
    %p117 = por %p115, %p116
    %p118 = scmp.ne.s32.totalorder %s104, %s105
    %p119 = scmp.eq.s32.totalorder %s16, 1
    %p120 = por %p118, %p119
    %p122 = scmp.ne.s32.totalorder %s105, %s121
    %p123 = scmp.eq.s32.totalorder %s16, 0
    %p124 = por %p122, %p123
    %s125 = sadd.s32 %s17, %s18
    %s126 = sadd.s32 %s36, %s32
    %s127 = ssub.s32 %s125, %s126
    %p128 = scmp.eq.s32.totalorder %s127, 0
    %s130 = sadd.s32 %s129, 1
    %s131 = scalar_select %p128, %s129, %s130
    %p134 = pneg %p128
    %p135 = scmp.eq.s32.totalorder %s10, 1
    %p136 = por %p134, %p135
    %p137 = scmp.ne.s32.totalorder %s129, %s132
    %p138 = scmp.eq.s32.totalorder %s10, 0
    %p139 = por %p137, %p138
    %p140 = scmp.ne.s32.totalorder %s129, %s132
    %p141 = scmp.eq.s32.totalorder %s15, 1
    %p142 = por %p140, %p141
    %p143 = scmp.ne.s32.totalorder %s132, %s133
    %p144 = scmp.eq.s32.totalorder %s15, 0
    %p145 = por %p143, %p144
    %p146 = scmp.ne.s32.totalorder %s132, %s133
    %p147 = scmp.eq.s32.totalorder %s16, 1
    %p148 = por %p146, %p147
    %p150 = scmp.ne.s32.totalorder %s133, %s149
    %p151 = scmp.eq.s32.totalorder %s16, 0
    %p152 = por %p150, %p151
    %p153 = scmp.le.s32.totalorder 1, %s10
    %p154 = scmp.lt.s32.totalorder %s10, 3
    %p155 = pnand %p153, %p154
    %p156 = pneg %p155
    // Predicated region
    $region9: #{cross_entropy_loss_2d.1} parent=5 // pred_check
      _
    $region10: #{cross_entropy_loss_2d.1} parent=5 // pred_check_branch
      %158 = sbr.rel (%p155) target = $region12
    $region11: #{cross_entropy_loss_2d.1} parent=5 // pred_region
      %s159 = ssub.s32 %s10, 1
    $region12: #{cross_entropy_loss_2d.1} parent=5 // pred_fallthru
      _
    %p160 = scmp.lt.s32.totalorder %s10, 2
    // Predicated region
    $region13: #{cross_entropy_loss_2d.1} parent=5 // pred_check
      %p161 = pneg %p160
    $region14: #{cross_entropy_loss_2d.1} parent=5 // pred_check_branch
      %163 = sbr.rel (%p161) target = $region16
    $region15: #{cross_entropy_loss_2d.1} parent=5 // pred_region
      // Predicated region
      $region17: #{cross_entropy_loss_2d.1} parent=15 // pred_check
        %p164 = pneg %p53
      $region18: #{cross_entropy_loss_2d.1} parent=15 // pred_check_branch
        %166 = sbr.rel (%p164) target = $region20
      $region19: #{cross_entropy_loss_2d.1} parent=15 // pred_region
        %s167 = sadd.s32 %s18, %s19
        %s168 = smul.u32 2, %s167
        %p169 = scmp.lt.s32.totalorder %s17, 1
        %s170 = scalar_select %p169, %s17, 1
        %p171 = scmp.lt.s32.totalorder %s168, 1
        %s172 = scalar_select %p171, %s168, 1
        %s173 = smul.addr %s170, 2
        %s174 = sadd.s32 %s172, %s173
        %s175 = smul.addr %s174, 4
        %s176 = scalar_lea.vmem %s0, %s175
        %s177 = sadd.s32 %s18, %s19
        %s178 = smul.u32 2, %s177
      $region20: #{cross_entropy_loss_2d.1} parent=15 // pred_fallthru
        _
      // Predicated region
      $region21: #{cross_entropy_loss_2d.1} parent=15 // pred_check
        %p179 = pneg %p83
      $region22: #{cross_entropy_loss_2d.1} parent=15 // pred_check_branch
        %181 = sbr.rel (%p179) target = $region24
      $region23: #{cross_entropy_loss_2d.1} parent=15 // pred_region
        %s182 = sadd.s32 %s18, %s19
        %s183 = smul.u32 2, %s182
        %p184 = scmp.lt.s32.totalorder %s17, 1
        %s185 = scalar_select %p184, %s17, 1
        %p186 = scmp.lt.s32.totalorder %s183, 1
        %s187 = scalar_select %p186, %s183, 1
        %s188 = smul.addr %s185, 2
        %s189 = sadd.s32 %s187, %s188
        %s190 = scalar_lea.vmem %s1, %s189
        %s191 = sadd.s32 %s18, %s19
        %s192 = smul.u32 2, %s191
      $region24: #{cross_entropy_loss_2d.1} parent=15 // pred_fallthru
        _
    $region16: #{cross_entropy_loss_2d.1} parent=5 // pred_fallthru
      _
    %p193 = scmp.le.s32.totalorder 1, %s10
    %p194 = scmp.lt.s32.totalorder %s10, 3
    %p195 = pnand %p193, %p194
    %p196 = pneg %p195
    // Predicated region
    $region25: #{cross_entropy_loss_2d.1} parent=5 // pred_check
      _
    $region26: #{cross_entropy_loss_2d.1} parent=5 // pred_check_branch
      %198 = sbr.rel (%p195) target = $region28
    $region27: #{cross_entropy_loss_2d.1} parent=5 // pred_region
      %s199 = ssub.s32 %s10, 1
      %s200 = sadd.s32 %s21, %s22
      %s201 = smul.u32 2, %s200
      %p202 = scmp.lt.s32.totalorder %s20, 1
      %s203 = scalar_select %p202, %s20, 1
      %p204 = scmp.lt.s32.totalorder %s201, 1
      %s205 = scalar_select %p204, %s201, 1
      %s206 = smul.addr %s203, 2
      %s207 = sadd.s32 %s205, %s206
      %s208 = smul.addr %s207, 4
      %s209 = scalar_lea.vmem %s0, %s208
      %p210 = pneg %p59
      %p211 = pneg %p56
      %s212 = sadd.s32 %s21, %s22
      %s213 = smul.u32 2, %s212
      %p214 = scmp.lt.s32.totalorder %s20, 1
      %s215 = scalar_select %p214, %s20, 1
      %p216 = scmp.lt.s32.totalorder %s213, 1
      %s217 = scalar_select %p216, %s213, 1
      %s218 = smul.addr %s215, 2
      %s219 = sadd.s32 %s217, %s218
      %s220 = scalar_lea.vmem %s1, %s219
      %p221 = pneg %p89
      %p222 = pneg %p86
      %p223 = pneg %p117
      %p224 = pneg %p114
      %s225 = sadd.s32 %s20, %s21
      %p226 = scmp.lt.s32.totalorder %s225, 1
      %s227 = scalar_select %p226, %s225, 1
      %s228 = smul.addr %s227, 2
      %s229 = scalar_lea.vmem %s2, %s228
      %p230 = pneg %p145
      %p231 = pneg %p142
      %s232 = sadd.s32 %s20, %s21
      %p233 = scmp.lt.s32.totalorder %s232, 1
      %s234 = scalar_select %p233, %s232, 1
      %s235 = smul.addr %s234, 2
      %s236 = scalar_lea.vmem %s3, %s235
      %s237 = sadd.s32 %s21, %s22
      %s238 = smul.u32 2, %s237
      %p239 = scmp.lt.s32.totalorder %s20, 1
      %s240 = scalar_select %p239, %s20, 1
      %p241 = scmp.lt.s32.totalorder %s238, 1
      %s242 = scalar_select %p241, %s238, 1
      %s243 = smul.addr %s240, 2
      %s244 = sadd.s32 %s242, %s243
      %s245 = smul.addr %s244, 4
      %s246 = scalar_lea.vmem %s0, %s245
      %s247 = sadd.s32 %s21, %s22
      %s248 = smul.u32 2, %s247
      %s249 = sadd.s32 %s21, %s22
      %s250 = smul.u32 2, %s249
      %p251 = scmp.lt.s32.totalorder %s20, 1
      %s252 = scalar_select %p251, %s20, 1
      %p253 = scmp.lt.s32.totalorder %s250, 1
      %s254 = scalar_select %p253, %s250, 1
      %s255 = smul.addr %s252, 2
      %s256 = sadd.s32 %s254, %s255
      %s257 = scalar_lea.vmem %s1, %s256
      %s258 = sadd.s32 %s21, %s22
      %s259 = smul.u32 2, %s258
      %s260 = sadd.s32 %s20, %s21
      %p261 = scmp.lt.s32.totalorder %s260, 1
      %s262 = scalar_select %p261, %s260, 1
      %s263 = smul.addr %s262, 2
      %s264 = scalar_lea.vmem %s2, %s263
      %s265 = sadd.s32 %s20, %s21
      %s266 = sadd.s32 %s20, %s21
      %p267 = scmp.lt.s32.totalorder %s266, 1
      %s268 = scalar_select %p267, %s266, 1
      %s269 = smul.addr %s268, 2
      %s270 = scalar_lea.vmem %s3, %s269
      %s271 = sadd.s32 %s20, %s21
      %p272 = scmp.eq.s32.totalorder %s22, 0
      // Predicated region
      $region29: #{cross_entropy_loss_2d.1} parent=27 // pred_check
        %p273 = pneg %p272
      $region30: #{cross_entropy_loss_2d.1} parent=27 // pred_check_branch
        %275 = sbr.rel (%p273) target = $region32
      $region31: #{cross_entropy_loss_2d.1} parent=27 // pred_region
        %v276 = vlaneseq
        %vm277 = vcmp.ge.s32.totalorder %v276, 0
        %vm278 = vcmp.lt.s32.totalorder %v276, 256
        %vm279 = vmand %vm277, %vm278
        %280 = vst.msk [vmem:[%s264] sm:$0x3] %vm279, 0.0
        %281 = vst.msk [vmem:[%s270] sm:$0x3] %vm279, 0.0
        %v282 = vlaneseq
        %v283 = vshrl.u32 %v282, 7
        %v285 = vunpack.c.l.s4 839922192
        %v286 = vunpack.c.0.s8 %v285
        %v287 = vlaneseq
        %v288 = vshrl.u32 %v287, 7
        %v289 = vsub.s32 %v286, %v288
        %v290 = vrot.slane %v283, %v289
        %291 = vst [vmem:[#allocation2] sm:$0xff] %v290
      $region32: #{cross_entropy_loss_2d.1} parent=27 // pred_fallthru
        _
      %v292 = vld [vmem:[%s246] sm:$0xff]
      %v293 = vld [vmem:[%s257] sm:$0x3]
      %v295 = vcombine.high %v292, %v292
      %vm297 = vcmask 1043456
      %v298 = vsel %vm297, %v292, -inf
      %v299 = vrot.slane %v298, 4
      %v300 = vmax.f32 %v298, %v299
      %v301 = vrot.slane %v300, 2
      %v302 = vmax.f32 %v300, %v301
      %v303 = vrot.slane %v302, 1
      %v304 = vmax.f32 %v302, %v303
      %v305 = vsel %vm297, %v295, -inf
      %v306 = vrot.slane %v305, 4
      %v307 = vmax.f32 %v305, %v306
      %v308 = vrot.slane %v307, 2
      %v309 = vmax.f32 %v307, %v308
      %v310 = vrot.slane %v309, 1
      %v311 = vmax.f32 %v309, %v310
      %v314 = vcombine.low %v304, %v311
      %v316 = vsub.f32 %v292, %v314
      %v317 = vmul.f32 %v316, 1.442695
      %v318 = vpow.pop %v317
      %v320 = vcombine.high %v318, %v318
      %v322 = vsel %vm297, %v318, 0.0
      %v323 = vrot.slane %v322, 4
      %v324 = vadd.f32 %v322, %v323
      %v325 = vrot.slane %v324, 2
      %v326 = vadd.f32 %v324, %v325
      %v327 = vrot.slane %v326, 1
      %v328 = vadd.f32 %v326, %v327
      %v329 = vsel %vm297, %v320, 0.0
      %v330 = vrot.slane %v329, 4
      %v331 = vadd.f32 %v329, %v330
      %v332 = vrot.slane %v331, 2
      %v333 = vadd.f32 %v331, %v332
      %v334 = vrot.slane %v333, 1
      %v335 = vadd.f32 %v333, %v334
      %v336 = vld [vmem:[#allocation2] sm:$0xff]
      %v337 = vlaneseq
      %v338 = vshrl.u32 %v337, 7
      %v339 = vsub.s32 0, %v338
      %v340 = vrot.slane %v293, %v339
      %v341 = vlaneseq
      %v342 = vshrl.u32 %v341, 7
      %v343 = vsub.s32 1, %v342
      %v344 = vrot.slane %v293, %v343
      %v345 = vcombine.low %v340, %v344
      %vm346 = vcmp.eq.s32.totalorder %v336, %v345
      %v347 = vsel %vm346, %v316, 0.0
      %v349 = vcombine.high %v347, %v347
      %v351 = vsel %vm297, %v347, 0.0
      %v352 = vrot.slane %v351, 4
      %v353 = vadd.f32 %v351, %v352
      %v354 = vrot.slane %v353, 2
      %v355 = vadd.f32 %v353, %v354
      %v356 = vrot.slane %v355, 1
      %v357 = vadd.f32 %v355, %v356
      %v358 = vsel %vm297, %v349, 0.0
      %v359 = vrot.slane %v358, 4
      %v360 = vadd.f32 %v358, %v359
      %v361 = vrot.slane %v360, 2
      %v362 = vadd.f32 %v360, %v361
      %v363 = vrot.slane %v362, 1
      %v364 = vadd.f32 %v362, %v363
      %v365 = vlog2.pop %v328
      %v366 = vmul.f32 %v365, 0.6931472
      %v367 = vlog2.pop %v335
      %v368 = vmul.f32 %v367, 0.6931472
      %v369 = vsub.f32 %v366, %v357
      %v370 = vsub.f32 %v368, %v364
      %v371 = vlaneseq
      %v372 = vand.u32 %v371, 127
      %v373 = vadd.s32 %v372, 128
      %s374 = sadd.s32 %s21, %s22
      %s375 = smul.u32 %s374, 256
      %v376 = vstv %s375
      %v377 = vadd.s32 %v376, %v372
      %v378 = vadd.s32 %v376, %v373
      %vm379 = vcmp.lt.s32.totalorder %v377, 256
      %vm380 = vcmp.lt.s32.totalorder %v378, 256
      %vm381 = vcmp.ne.s32.totalorder %v293, 255
      %v382 = vsel %vm381, 1, 0
      %v383 = vlaneseq
      %v384 = vshrl.u32 %v383, 7
      %v385 = vsub.s32 0, %v384
      %v386 = vrot.slane %v382, %v385
      %v387 = vlaneseq
      %v388 = vshrl.u32 %v387, 7
      %v389 = vsub.s32 1, %v388
      %v390 = vrot.slane %v382, %v389
      %vm391 = vcmp.ne.s32.totalorder %v386, 0
      %vm392 = vcmp.ne.s32.totalorder %v390, 0
      %vm393 = vmand %vm379, %vm391
      %vm394 = vmand %vm380, %vm392
      %v395 = vld [vmem:[%s264] sm:$0x3]
      %v396 = vsel %vm393, %v369, 0.0
      %v397 = vsel %vm394, %v370, 0.0
      %v400 = vcombine.low %v396, %v397
      %v402 = vunpack.c.l.s4 1966171168
      %v403 = vunpack.c.0.s8 %v402
      %v404 = vlaneseq
      %v405 = vshrl.u32 %v404, 7
      %v406 = vsub.s32 %v403, %v405
      %v407 = vrot.slane %v400, %v406
      %v409 = vunpack.c.l.s4 1966171168
      %v410 = vunpack.c.0.s8 %v409
      %v411 = vlaneseq
      %v412 = vshrl.u32 %v411, 7
      %v413 = vsub.s32 %v410, %v412
      %v414 = vrot.slane %v407, %v413
      %v416 = vadd.f32 %v395, %v414
      %v417 = vlaneseq
      %vm418 = vcmp.ge.s32.totalorder %v417, 0
      %vm419 = vcmp.lt.s32.totalorder %v417, 256
      %vm420 = vmand %vm418, %vm419
      %421 = vst.msk [vmem:[%s264] sm:$0x3] %vm420, %v416
      %v422 = vld [vmem:[%s270] sm:$0x3]
      %v423 = vsel %vm393, 1.0, 0.0
      %v424 = vsel %vm394, 1.0, 0.0
      %v427 = vcombine.low %v423, %v424
      %v429 = vunpack.c.l.s4 1966171168
      %v430 = vunpack.c.0.s8 %v429
      %v431 = vlaneseq
      %v432 = vshrl.u32 %v431, 7
      %v433 = vsub.s32 %v430, %v432
      %v434 = vrot.slane %v427, %v433
      %v436 = vunpack.c.l.s4 1966171168
      %v437 = vunpack.c.0.s8 %v436
      %v438 = vlaneseq
      %v439 = vshrl.u32 %v438, 7
      %v440 = vsub.s32 %v437, %v439
      %v441 = vrot.slane %v434, %v440
      %v443 = vadd.f32 %v422, %v441
      %444 = vst.msk [vmem:[%s270] sm:$0x3] %vm420, %v443
      %s445 = sadd.s32 %s20, %s21
      %p446 = scmp.lt.s32.totalorder %s445, 1
      %s447 = scalar_select %p446, %s445, 1
      %s448 = smul.addr %s447, 2
      %s449 = scalar_lea.vmem %s2, %s448
      %s450 = sadd.s32 %s20, %s21
      %p451 = scmp.lt.s32.totalorder %s450, 1
      %s452 = scalar_select %p451, %s450, 1
      %s453 = smul.addr %s452, 2
      %s454 = scalar_lea.vmem %s3, %s453
      // Predicated region
      $region33: #{cross_entropy_loss_2d.1} parent=27 // pred_check
        %p455 = pneg %p114
      $region34: #{cross_entropy_loss_2d.1} parent=27 // pred_check_branch
        %457 = sbr.rel (%p455) target = $region36
      $region35: #{cross_entropy_loss_2d.1} parent=27 // pred_region
        %s458 = sadd.s32 %s20, %s21
      $region36: #{cross_entropy_loss_2d.1} parent=27 // pred_fallthru
        _
      // Predicated region
      $region37: #{cross_entropy_loss_2d.1} parent=27 // pred_check
        %p459 = pneg %p142
      $region38: #{cross_entropy_loss_2d.1} parent=27 // pred_check_branch
        %461 = sbr.rel (%p459) target = $region40
      $region39: #{cross_entropy_loss_2d.1} parent=27 // pred_region
        %s462 = sadd.s32 %s20, %s21
      $region40: #{cross_entropy_loss_2d.1} parent=27 // pred_fallthru
        _
    $region28: #{cross_entropy_loss_2d.1} parent=5 // pred_fallthru
      _
    %p463 = scmp.le.s32.totalorder 2, %s10
    // Predicated region
    $region41: #{cross_entropy_loss_2d.1} parent=5 // pred_check
      %p464 = pneg %p463
    $region42: #{cross_entropy_loss_2d.1} parent=5 // pred_check_branch
      %466 = sbr.rel (%p464) target = $region44
    $region43: #{cross_entropy_loss_2d.1} parent=5 // pred_region
      %s467 = ssub.s32 %s10, 2
      // Predicated region
      $region45: #{cross_entropy_loss_2d.1} parent=43 // pred_check
        %p468 = pneg %p120
      $region46: #{cross_entropy_loss_2d.1} parent=43 // pred_check_branch
        %470 = sbr.rel (%p468) target = $region48
      $region47: #{cross_entropy_loss_2d.1} parent=43 // pred_region
        %s471 = sadd.s32 %s23, %s24
        %p472 = scmp.lt.s32.totalorder %s471, 1
        %s473 = scalar_select %p472, %s471, 1
        %s474 = smul.addr %s473, 2
        %s475 = scalar_lea.vmem %s2, %s474
      $region48: #{cross_entropy_loss_2d.1} parent=43 // pred_fallthru
        _
      // Predicated region
      $region49: #{cross_entropy_loss_2d.1} parent=43 // pred_check
        %p476 = pneg %p148
      $region50: #{cross_entropy_loss_2d.1} parent=43 // pred_check_branch
        %478 = sbr.rel (%p476) target = $region52
      $region51: #{cross_entropy_loss_2d.1} parent=43 // pred_region
        %s479 = sadd.s32 %s23, %s24
        %p480 = scmp.lt.s32.totalorder %s479, 1
        %s481 = scalar_select %p480, %s479, 1
        %s482 = smul.addr %s481, 2
        %s483 = scalar_lea.vmem %s3, %s482
      $region52: #{cross_entropy_loss_2d.1} parent=43 // pred_fallthru
        _
    $region44: #{cross_entropy_loss_2d.1} parent=5 // pred_fallthru
      _
  $region6: #{cross_entropy_loss_2d.1} parent=0 // loop_footer
    %s14 = sadd.s32 1, %s10
  $region7: #{cross_entropy_loss_2d.1} parent=0 // loop_footer_branch
    %9 = sbr.rel target = $region3
  $region8: #{cross_entropy_loss_2d.1} parent=0 // loop_exit
    _

</llo_original>
